<compile_context>
chip_gen: v6e
topology: v6e:2x2x1
jax: 0.10.0
libtpu: 0.0.40
codegen_flags: <defaults>
</compile_context>

<pallas_src>
import jax
import jax.numpy as jnp
from jax import lax
from jax.experimental import pallas as pl
from jax.experimental.pallas import tpu as pltpu

_LANE = 128
_SUBLANE_MIN = {4: 8, 2: 16, 1: 32}
_TARGET_BLOCK_BYTES = 4 * 1024 * 1024    # ~roofline plateau per measured data
_MIN_SPLIT_BLOCK_BYTES = 1 * 1024 * 1024  # don't split below this for megacore


# ---------------------------------------------------------------------------
# Kernels
# ---------------------------------------------------------------------------
def _fbn_row_kernel(x_ref, p_ref, o_ref):
    """x: (TR, TC); p: (TR, 2) = [scale | shift], broadcast across lanes."""
    p = p_ref[...]
    x = x_ref[...].astype(p.dtype)
    o_ref[...] = (x * p[:, 0:1] + p[:, 1:2]).astype(o_ref.dtype)


def _fbn_lane_kernel(x_ref, p_ref, o_ref):
    """x: (TR, TC); p: (2, TC) = [scale ; shift], broadcast across sublanes."""
    p = p_ref[...]
    x = x_ref[...].astype(p.dtype)
    o_ref[...] = (x * p[0:1, :] + p[1:2, :]).astype(o_ref.dtype)


# ---------------------------------------------------------------------------
# Tiling plan
# ---------------------------------------------------------------------------
def _round_down(v, unit):
    return (v // unit) * unit


def _pick_tile(total, cap, unit):
    """Largest multiple of `unit` <= min(cap, total) that divides `total`
    exactly; search is bounded at cap//2 so awkward sizes keep large blocks
    and simply accept a ragged (Pallas-masked) last block."""
    cap = max(unit, _round_down(min(cap, total), unit))
    floor = max(unit, cap // 2)
    t = cap
    while t >= floor:
        if total % t == 0:
            return t
        t -= unit
    return cap


def _plan_tiles(rows, cols, itemsize):
    min_sub = _SUBLANE_MIN.get(itemsize, 8)
    base_rows = min(rows, min_sub)
    row_bytes = cols * itemsize

    if base_rows * row_bytes > _TARGET_BLOCK_BYTES and cols > _LANE:
        # Even the thinnest legal row stripe is too fat (huge H*W):
        # tile the lane axis in multiples of 128 as well.
        tile_r = base_rows
        cap_c = max(_LANE, _TARGET_BLOCK_BYTES // max(tile_r * itemsize, 1))
        tile_c = _pick_tile(cols, cap_c, _LANE)
    else:
        tile_c = cols
        if rows <= min_sub:
            tile_r = rows
        else:
            cap_r = max(min_sub, _TARGET_BLOCK_BYTES // max(row_bytes, 1))
            tile_r = _pick_tile(rows, cap_r, min_sub)

    # v7x megacore: expose >= 2 grid steps when blocks can stay >= ~1 MiB
    # (below that the ~0.35 us per-step overhead dominates; leave grid=1).
    def _steps(tr, tc):
        return pl.cdiv(rows, tr) * pl.cdiv(cols, tc)

    while _steps(tile_r, tile_c) < 2:
        new_r = _round_down(tile_r // 2, min_sub)
        if (new_r >= min_sub and new_r < tile_r
                and new_r * tile_c * itemsize >= _MIN_SPLIT_BLOCK_BYTES):
            tile_r = new_r
            continue
        new_c = _round_down(tile_c // 2, _LANE)
        if (new_c >= _LANE and new_c < tile_c
                and tile_r * new_c * itemsize >= _MIN_SPLIT_BLOCK_BYTES):
            tile_c = new_c
            continue
        break
    return tile_r, tile_c


def _compute_dtype(x_dtype):
    """bf16 math only on chips with a bf16 VPU (v6e/v7x); f32 otherwise."""
    if x_dtype == jnp.bfloat16:
        try:
            kind = jax.devices()[0].device_kind.lower()
        except Exception:
            kind = ""
        if all(v not in kind for v in ("v2", "v3", "v4", "v5")):
            return jnp.bfloat16
    return jnp.float32


# ---------------------------------------------------------------------------
# Wrapper
# ---------------------------------------------------------------------------
def frozen_batch_norm_2d(x, weight, bias, running_mean, running_var, eps=1e-5):
    """FrozenBatchNorm2d.forward for NCHW `x` with (C,) frozen buffers.

    NOTE: the output keeps x.dtype. Strict PyTorch type promotion for
    half/bf16 activations against f32 buffers would yield f32; this is a
    deliberate deviation matching common FrozenBN usage.
    """
    N, C, H, W = x.shape
    HW = H * W
    itemsize = jnp.dtype(x.dtype).itemsize
    cdtype = _compute_dtype(x.dtype)
    c_itemsize = jnp.dtype(cdtype).itemsize

    # Fold frozen buffers into per-channel scale/shift (tiny (C,) f32 math).
    w32 = weight.astype(jnp.float32)
    b32 = bias.astype(jnp.float32)
    m32 = running_mean.astype(jnp.float32)
    v32 = running_var.astype(jnp.float32)
    scale = w32 * lax.rsqrt(v32 + jnp.float32(eps))   # (C,)
    shift = b32 - m32 * scale                         # (C,)

    # Layout choice (lane density is the biggest measured lever):
    #  * rows: (N*C, H*W) slab; per-row scale broadcast over lanes.  Use when
    #    H*W is already lane-dense (>= 128).
    #  * wide: (N, C*H*W) slab; per-lane scale row broadcast over sublanes.
    #    Use for small spatial maps (H*W < 128) when N gives >= 8 sublanes.
    use_wide = (HW < _LANE) and (N >= 8)

    if use_wide:
        rows, cols = N, C * HW
        x2 = x.reshape(rows, cols)                       # free view
        scale_l = jnp.repeat(scale, HW)                  # lane l -> channel l // HW
        shift_l = jnp.repeat(shift, HW)
        params = jnp.stack([scale_l, shift_l], axis=0).astype(cdtype)   # (2, cols)
        kernel = _fbn_lane_kernel
    else:
        rows, cols = N * C, HW
        x2 = x.reshape(rows, cols)                       # free view
        scale_r = jnp.tile(scale, (N,))                  # row r -> channel r % C
        shift_r = jnp.tile(shift, (N,))
        params = jnp.stack([scale_r, shift_r], axis=1).astype(cdtype)   # (rows, 2)
        kernel = _fbn_row_kernel

    tile_r, tile_c = _plan_tiles(rows, cols, itemsize)
    grid = (pl.cdiv(rows, tile_r), pl.cdiv(cols, tile_c))

    if use_wide:
        p_spec = pl.BlockSpec((2, tile_c), lambda i, j: (0, j))
        p_block_bytes = 2 * tile_c * c_itemsize
    else:
        p_spec = pl.BlockSpec((tile_r, 2), lambda i, j: (i, 0))
        p_block_bytes = tile_r * 2 * c_itemsize

    # Budget: double-buffered in + out + params blocks, plus ~2 MiB slack.
    x_block_bytes = tile_r * tile_c * itemsize
    vmem_limit = 2 * (2 * x_block_bytes + p_block_bytes) + 2 * 1024 * 1024
    vmem_limit = int(min(max(vmem_limit, 4 * 1024 * 1024), 48 * 1024 * 1024))

    total = rows * cols
    cost = pl.CostEstimate(
        flops=2 * total,
        transcendentals=0,
        bytes_accessed=2 * total * itemsize + int(params.size) * c_itemsize,
    )

    out2 = pl.pallas_call(
        kernel,
        out_shape=jax.ShapeDtypeStruct((rows, cols), x.dtype),
        grid_spec=pltpu.PrefetchScalarGridSpec(
            num_scalar_prefetch=0,
            grid=grid,
            in_specs=[
                pl.BlockSpec((tile_r, tile_c), lambda i, j: (i, j)),
                p_spec,
            ],
            out_specs=pl.BlockSpec((tile_r, tile_c), lambda i, j: (i, j)),
        ),
        compiler_params=pltpu.CompilerParams(
            dimension_semantics=("parallel", "parallel"),
            vmem_limit_bytes=vmem_limit,
        ),
        cost_estimate=cost,
    )(x2, params)

    return out2.reshape(N, C, H, W)


# ---------------------------------------------------------------------------
# Self-test
# ---------------------------------------------------------------------------
if __name__ == "__main__":
    key = jax.random.PRNGKey(0)
    kx, kw, kb, km, kv, kx2 = jax.random.split(key, 6)

    eps = 1e-5

    def reference(x, weight, bias, mean, var, eps):
        c = x.shape[1]
        s = weight * lax.rsqrt(var + eps)
        t = bias - mean * s
        return x * s.reshape(1, c, 1, 1) + t.reshape(1, c, 1, 1)

    # Case 1: primary shape (rows layout; H*W = 256 >= 128).
    N, C, H, W = 2, 4, 16, 16
    x = jax.random.normal(kx, (N, C, H, W), dtype=jnp.float32)
    weight = 1.0 + 0.1 * jax.random.normal(kw, (C,), dtype=jnp.float32)
    bias = 0.1 * jax.random.normal(kb, (C,), dtype=jnp.float32)
    running_mean = 0.1 * jax.random.normal(km, (C,), dtype=jnp.float32)
    running_var = (jnp.ones((C,), dtype=jnp.float32) - eps
                   + 0.05 * jax.random.uniform(kv, (C,), dtype=jnp.float32))

    out = frozen_batch_norm_2d(x, weight, bias, running_mean, running_var, eps)
    out = jax.block_until_ready(out)
    ref = reference(x, weight, bias, running_mean, running_var, eps)
    assert out.shape == (N, C, H, W)
    assert jnp.allclose(out, ref, atol=1e-5, rtol=1e-5)

    # Case 2: small-spatial shape exercising the lane-dense (N, C*H*W) path.
    N2, C2, H2, W2 = 8, 4, 4, 4          # H*W = 16 < 128, N >= 8
    x_s = jax.random.normal(kx2, (N2, C2, H2, W2), dtype=jnp.float32)
    out_s = frozen_batch_norm_2d(x_s, weight, bias, running_mean, running_var, eps)
    out_s = jax.block_until_ready(out_s)
    ref_s = reference(x_s, weight, bias, running_mean, running_var, eps)
    assert out_s.shape == (N2, C2, H2, W2)
    assert jnp.allclose(out_s, ref_s, atol=1e-5, rtol=1e-5)

    print("KERNEL_OK")
</pallas_src>

<mosaic_0001>
module attributes {stable_mosaic.version = 11 : i64} {
  func.func @_fbn_row_kernel(%arg0: i32, %arg1: i32, %arg2: memref<8x256xf32, #tpu.memory_space<vmem>>, %arg3: memref<8x2xf32, #tpu.memory_space<vmem>>, %arg4: memref<8x256xf32, #tpu.memory_space<vmem>>) attributes {dimension_semantics = [#tpu.dimension_semantics<parallel>, #tpu.dimension_semantics<parallel>], iteration_bounds = array<i64: 1, 1>, scalar_prefetch = 0 : i64, scratch_operands = 0 : i64, tpu.core_type = #tpu.core_type<tc>, window_params = [{transform_indices = @transform_0, window_bounds = array<i64: 8, 256>}, {transform_indices = @transform_1, window_bounds = array<i64: 8, 2>}, {transform_indices = @transform_2, window_bounds = array<i64: 8, 256>}]} {
    %c0 = arith.constant 0 : index
    %c0_0 = arith.constant 0 : index
    %0 = vector.load %arg3[%c0, %c0_0] : memref<8x2xf32, #tpu.memory_space<vmem>>, vector<8x2xf32>
    %c0_1 = arith.constant 0 : index
    %c0_2 = arith.constant 0 : index
    %1 = vector.load %arg2[%c0_1, %c0_2] : memref<8x256xf32, #tpu.memory_space<vmem>>, vector<8x256xf32>
    %2 = vector.extract_strided_slice %0 {offsets = [0, 0], sizes = [8, 1], strides = [1, 1]} : vector<8x2xf32> to vector<8x1xf32>
    %3 = vector.broadcast %2 : vector<8x1xf32> to vector<8x256xf32>
    %4 = arith.mulf %1, %3 : vector<8x256xf32>
    %5 = vector.extract_strided_slice %0 {offsets = [0, 1], sizes = [8, 1], strides = [1, 1]} : vector<8x2xf32> to vector<8x1xf32>
    %6 = vector.broadcast %5 : vector<8x1xf32> to vector<8x256xf32>
    %7 = arith.addf %4, %6 : vector<8x256xf32>
    %c0_3 = arith.constant 0 : index
    %c0_4 = arith.constant 0 : index
    %8 = vector.load %arg4[%c0_3, %c0_4] : memref<8x256xf32, #tpu.memory_space<vmem>>, vector<8x256xf32>
    tpu.vector_store %arg4[%c0_3, %c0_4], %7 {strides = array<i32>} : memref<8x256xf32, #tpu.memory_space<vmem>>, vector<8x256xf32>,
    return
  }
  func.func @transform_0(%arg0: i32, %arg1: i32) -> (i32, i32) {
    %c0_i32 = arith.constant 0 : i32
    return %arg0, %arg1 : i32, i32
  }
  func.func @transform_1(%arg0: i32, %arg1: i32) -> (i32, i32) {
    %c0_i32 = arith.constant 0 : i32
    %c0_i32_0 = arith.constant 0 : i32
    return %arg0, %c0_i32 : i32, i32
  }
  func.func @transform_2(%arg0: i32, %arg1: i32) -> (i32, i32) {
    %c0_i32 = arith.constant 0 : i32
    return %arg0, %arg1 : i32, i32
  }
}

</mosaic_0001>

<llo_original>
// kernel: tpu_custom_call.1
$region0: #{tpu_custom_call.1}
  #allocation0 [shape = 'u32[]', space=smem, size = 0x4, offset = 0x4, fixed_abs, tag = 'smem constant byte address 0x4 - core index']
  #allocation1 [shape = 'u32[144,128]{1,0:T(1,128)}', space=vmem, size = 0x12000, scoped, tag = 'internal scratch']
  %s0 = inlined_call_operand.hbm [shape: f32[8,256], index: 0, kind: input, shape index: {}]
  %s1 = inlined_call_operand.vmem [shape: f32[8,2], index: 1, kind: input, shape index: {}]
  %s2 = inlined_call_operand.hbm [shape: f32[8,256], index: 2, kind: output, shape index: {}]
  %s3 = sld [smem:[#allocation0]]
  $region22: #{tpu_custom_call.1} parent=0
    _
  %s5 = ssub.s32 1, %s3
  %s6 = scalar_select 0, %s5, %s3
  $region1: #{tpu_custom_call.1} parent=0
    #allocation2 [shape = 'u8[8192]{0}', space=vmem, size = 0x2000, scoped, tag = 'input window, operand 0, single buffered']
    #allocation3 [shape = 's32[1]{0}', space=sflag, size = 0x4, scoped, tag = 'scoped memory for tpu_custom_call.1']
    #allocation4 [shape = 's32[1]{0}', space=sflag, size = 0x4, scoped, tag = 'scoped memory for tpu_custom_call.1']
    #allocation5 [shape = 'u8[8192]{0}', space=vmem, size = 0x2000, scoped, tag = 'output window, operand 0, single buffered']
    %7 = vsyncpa [#allocation3], 0
    %8 = vsyncpa [#allocation4], 0
    // Predicated region
    $region2: #{tpu_custom_call.1} parent=1 // pred_check
      _
    $region3: #{tpu_custom_call.1} parent=1 // pred_check_branch
      %10 = sbr.rel (0) target = $region5
    $region4: #{tpu_custom_call.1} parent=1 // pred_region
      %s12 = ssub.s32 256, 256
      %13 = vsyncadd [#allocation3], %s12
      %s15 = sshll.u32 [#allocation2], 4
      %s16 = int_to_ptr.vmem [resolvable:$true] %s15
      %18 = dma.hbm_to_vmem [thread:$0]  %s0, 256, %s16, [#allocation3]
    $region5: #{tpu_custom_call.1} parent=1 // pred_fallthru
      _
    // Predicated region
    $region6: #{tpu_custom_call.1} parent=1 // pred_check
      _
    $region7: #{tpu_custom_call.1} parent=1 // pred_check_branch
      %20 = sbr.rel (0) target = $region9
    $region8: #{tpu_custom_call.1} parent=1 // pred_region
      _
    $region9: #{tpu_custom_call.1} parent=1 // pred_fallthru
      _
    // Predicated region
    $region10: #{tpu_custom_call.1} parent=1 // pred_check
      _
    $region11: #{tpu_custom_call.1} parent=1 // pred_check_branch
      %22 = sbr.rel (0) target = $region13
    $region12: #{tpu_custom_call.1} parent=1 // pred_region
      %23 = dma.done [#allocation3], 256
    $region13: #{tpu_custom_call.1} parent=1 // pred_fallthru
      _
    %v24 = vld [vmem:[%s1] sm:$0xff]
    %v25 = vld [vmem:[#allocation2] sm:$0xff]
    %v26 = vld [vmem:[#allocation2 + $0x8] sm:$0xff]
    %28 = vset.pattern.permute.xlu0 0
    %29 = vperm.xlu0 %28, %v24
    %v30 = vpop.permute.xlu0 %29
    %v32 = vmul.f32 %v25, %v30
    %v33 = vmul.f32 %v26, %v30
    %34 = vset.pattern.permute.xlu0 1
    %35 = vperm.xlu0 %34, %v24
    %v36 = vpop.permute.xlu0 %35
    %v38 = vadd.f32 %v32, %v36
    %v39 = vadd.f32 %v33, %v36
    %40 = vst [vmem:[#allocation5] sm:$0xff] %v38
    %41 = vst [vmem:[#allocation5 + $0x8] sm:$0xff] %v39
    // Predicated region
    $region14: #{tpu_custom_call.1} parent=1 // pred_check
      _
    $region15: #{tpu_custom_call.1} parent=1 // pred_check_branch
      %43 = sbr.rel (0) target = $region17
    $region16: #{tpu_custom_call.1} parent=1 // pred_region
      %s45 = ssub.s32 256, 256
      %46 = vsyncadd [#allocation4], %s45
      %s48 = sshll.u32 [#allocation5], 4
      %s49 = int_to_ptr.vmem [resolvable:$true] %s48
      %51 = dma.vmem_to_hbm [thread:$0]  %s49, 256, %s2, [#allocation4]
    $region17: #{tpu_custom_call.1} parent=1 // pred_fallthru
      _
    // Predicated region
    $region18: #{tpu_custom_call.1} parent=1 // pred_check
      _
    $region19: #{tpu_custom_call.1} parent=1 // pred_check_branch
      %53 = sbr.rel (0) target = $region21
    $region20: #{tpu_custom_call.1} parent=1 // pred_region
      %54 = dma.done [#allocation4], 256
    $region21: #{tpu_custom_call.1} parent=1 // pred_fallthru
      _
    %55 = vsyncpa [#allocation3], 1
    %56 = vsyncpa [#allocation4], 1

</llo_original>
